<compile_context>
chip_gen: v7x
topology: tpu7x:2x2x1
jax: 0.10.0
libtpu: 0.0.40
codegen_flags: <defaults>
</compile_context>

<pallas_src>
import jax
import jax.numpy as jnp
from jax.experimental import pallas as pl
from jax.experimental.pallas import tpu as pltpu


def _round_up(x, m):
    return ((x + m - 1) // m) * m


def predictor_mlp_kernel(x_ref, w1_ref, w2_ref, w3_ref, out_ref):
    # x:   [TB, IN_PAD]        (obs || action || 1, zero padded)
    # w1:  [IN_PAD, H_PAD]     (last real row = b1, plus a 1 that creates the ones column)
    # w2:  [H_PAD, H_PAD]      (row `hidden` = b2, diagonal 1 propagates the ones column)
    # w3:  [H_PAD, OUT_PAD]    (row `hidden` = b3)
    # out: [TB, OUT_PAD]
    h1 = jnp.maximum(
        jnp.dot(x_ref[...], w1_ref[...], preferred_element_type=jnp.float32), 0.0)
    h2 = jnp.maximum(
        jnp.dot(h1, w2_ref[...], preferred_element_type=jnp.float32), 0.0)
    # output_activation = identity
    out_ref[...] = jnp.dot(h2, w3_ref[...], preferred_element_type=jnp.float32)


def init_predictor_params(key, hidden_size=64, num_hidden_layers=2,
                          action_size=5, state_size=2, reward_size=1):
    """Deterministic synthetic init; logical shapes match the PyTorch module."""
    assert num_hidden_layers == 2, "kernel below is written for 2 hidden layers"
    in_dim = state_size + action_size
    out_dim = state_size + reward_size
    k1, k2, k3, k4, k5, k6 = jax.random.split(key, 6)
    scale = 0.1
    w1 = scale * jax.random.normal(k1, (in_dim, hidden_size), jnp.float32)
    b1 = scale * jax.random.normal(k4, (1, hidden_size), jnp.float32)
    w2 = scale * jax.random.normal(k2, (hidden_size, hidden_size), jnp.float32)
    b2 = scale * jax.random.normal(k5, (1, hidden_size), jnp.float32)
    w3 = scale * jax.random.normal(k3, (hidden_size, out_dim), jnp.float32)
    b3 = scale * jax.random.normal(k6, (1, out_dim), jnp.float32)
    return (w1, b1, w2, b2, w3, b3)


def pack_params_for_kernel(params, state_size=2):
    """Fold biases into augmented weight matrices and pad to TPU-friendly shapes.

    The input tile carries a trailing ones column (index in_dim); W1a's row in_dim holds
    b1 and a 1 at column `hidden`, so h1[:, hidden] == 1 after ReLU.  W2a/W3a use that
    ones column the same way for b2/b3.  All other padded entries are exactly zero, so
    the real output columns are unchanged (within f32 rounding).
    """
    w1, b1, w2, b2, w3, b3 = params
    in_dim, hidden = w1.shape
    out_dim = w3.shape[1]

    in_pad = _round_up(in_dim + 1, 8)        # +1 for the ones column      -> 8
    h_pad = _round_up(hidden + 1, 128)       # +1 for propagated ones col  -> 128
    out_pad = _round_up(out_dim, 8)          # 3 -> 8 (lane-light output; no 128-wide writeback)

    w1a = jnp.zeros((in_pad, h_pad), jnp.float32)
    w1a = w1a.at[:in_dim, :hidden].set(w1)
    w1a = w1a.at[in_dim, :hidden].set(b1[0])
    w1a = w1a.at[in_dim, hidden].set(1.0)    # ones column at index `hidden`

    w2a = jnp.zeros((h_pad, h_pad), jnp.float32)
    w2a = w2a.at[:hidden, :hidden].set(w2)
    w2a = w2a.at[hidden, :hidden].set(b2[0])
    w2a = w2a.at[hidden, hidden].set(1.0)    # propagate ones column

    w3a = jnp.zeros((h_pad, out_pad), jnp.float32)
    w3a = w3a.at[:hidden, :out_dim].set(w3)
    w3a = w3a.at[hidden, :out_dim].set(b3[0])

    dims = dict(in_dim=in_dim, in_pad=in_pad, h_pad=h_pad,
                out_dim=out_dim, out_pad=out_pad, state_size=state_size)
    return (w1a, w2a, w3a), dims


def predictor_forward(obs, action, packed_params, dims):
    """obs: [B, state], action: [B, action] -> (s_ [B, state], r [B, reward])."""
    w1a, w2a, w3a = packed_params
    obs = obs.astype(jnp.float32)
    action = action.astype(jnp.float32)

    B = obs.shape[0]
    in_dim = dims["in_dim"]
    in_pad = dims["in_pad"]
    h_pad = dims["h_pad"]
    out_dim = dims["out_dim"]
    out_pad = dims["out_pad"]
    state_size = dims["state_size"]

    # Fused first-layer input: obs || action || 1, zero-padded to in_pad columns.
    x = jnp.concatenate([obs, action, jnp.ones((B, 1), jnp.float32)], axis=1)
    if in_pad != in_dim + 1:
        x = jnp.pad(x, ((0, 0), (0, in_pad - (in_dim + 1))))

    # Batch tiling: sublane-align, cap at 2048 rows; if the batch is large enough, clamp
    # so there are >= 2 grid steps (keeps both v7x TensorCores busy via "parallel").
    B8 = _round_up(B, 8)
    TB = min(2048, B8)
    if B8 >= 16:
        half = _round_up((B8 + 1) // 2, 8)
        TB = min(TB, half)
    B_pad = _round_up(B8, TB)
    if B_pad != B:
        x = jnp.pad(x, ((0, B_pad - B), (0, 0)))   # padded rows -> zeros -> output zeros (discarded)
    n_tiles = B_pad // TB

    const = lambda i: (0, 0)          # weights: VMEM-resident across grid steps
    batch = lambda i: (i, 0)          # batch-tiled activations

    out = pl.pallas_call(
        predictor_mlp_kernel,
        out_shape=jax.ShapeDtypeStruct((B_pad, out_pad), jnp.float32),
        grid_spec=pltpu.PrefetchScalarGridSpec(
            num_scalar_prefetch=0,
            grid=(n_tiles,),
            in_specs=[
                pl.BlockSpec((TB, in_pad), batch),       # x (obs||action||1)
                pl.BlockSpec((in_pad, h_pad), const),    # W1 augmented
                pl.BlockSpec((h_pad, h_pad), const),     # W2 augmented
                pl.BlockSpec((h_pad, out_pad), const),   # W3 augmented
            ],
            out_specs=pl.BlockSpec((TB, out_pad), batch),
        ),
        compiler_params=pltpu.CompilerParams(
            dimension_semantics=("parallel",),           # megacore / v7x 2-TC sharding
        ),
    )(x, w1a, w2a, w3a)

    out = out[:B, :out_dim]
    s_ = out[:, :state_size]
    r = out[:, state_size:]
    return s_, r


def _reference_forward(obs, action, params, state_size=2):
    x = jnp.concatenate([obs, action], axis=1).astype(jnp.float32)
    w1, b1, w2, b2, w3, b3 = params
    h = jnp.maximum(x @ w1 + b1, 0.0)
    h = jnp.maximum(h @ w2 + b2, 0.0)
    out = h @ w3 + b3
    return out[:, :state_size], out[:, state_size:]


if __name__ == "__main__":
    hidden_size = 64
    action_size = 5
    state_size = 2
    reward_size = 1
    batch = 8

    key = jax.random.PRNGKey(0)
    k_params, k_obs, k_act = jax.random.split(key, 3)
    params = init_predictor_params(k_params, hidden_size=hidden_size,
                                   num_hidden_layers=2,
                                   action_size=action_size,
                                   state_size=state_size,
                                   reward_size=reward_size)
    packed_params, dims = pack_params_for_kernel(params, state_size=state_size)

    obs = jax.random.normal(k_obs, (batch, state_size), jnp.float32)
    action = jax.random.normal(k_act, (batch, action_size), jnp.float32)

    s_, r = predictor_forward(obs, action, packed_params, dims)
    s_ = jax.block_until_ready(s_)
    r = jax.block_until_ready(r)

    # sanity check against a pure-JAX reference on the unpadded params
    s_ref, r_ref = _reference_forward(obs, action, params, state_size=state_size)
    assert s_.shape == (batch, state_size) and r.shape == (batch, reward_size)
    assert jnp.allclose(s_, s_ref, atol=1e-5, rtol=1e-5)
    assert jnp.allclose(r, r_ref, atol=1e-5, rtol=1e-5)

    print("KERNEL_OK")
</pallas_src>

<mosaic_0001>
module attributes {stable_mosaic.version = 11 : i64} {
  func.func @predictor_mlp_kernel(%arg0: i32, %arg1: memref<8x8xf32, #tpu.memory_space<vmem>>, %arg2: memref<8x128xf32, #tpu.memory_space<vmem>>, %arg3: memref<128x128xf32, #tpu.memory_space<vmem>>, %arg4: memref<128x8xf32, #tpu.memory_space<vmem>>, %arg5: memref<8x8xf32, #tpu.memory_space<vmem>>) attributes {dimension_semantics = [#tpu.dimension_semantics<parallel>], iteration_bounds = array<i64: 1>, scalar_prefetch = 0 : i64, scratch_operands = 0 : i64, tpu.core_type = #tpu.core_type<tc>, window_params = [{transform_indices = @transform_0, window_bounds = array<i64: 8, 8>}, {pipeline_mode = #tpu.pipeline_mode<synchronous>, transform_indices = @transform_1, window_bounds = array<i64: 8, 128>}, {pipeline_mode = #tpu.pipeline_mode<synchronous>, transform_indices = @transform_2, window_bounds = array<i64: 128, 128>}, {pipeline_mode = #tpu.pipeline_mode<synchronous>, transform_indices = @transform_3, window_bounds = array<i64: 128, 8>}, {transform_indices = @transform_4, window_bounds = array<i64: 8, 8>}]} {
    %c0 = arith.constant 0 : index
    %c0_0 = arith.constant 0 : index
    %0 = vector.load %arg1[%c0, %c0_0] : memref<8x8xf32, #tpu.memory_space<vmem>>, vector<8x8xf32>
    %c0_1 = arith.constant 0 : index
    %c0_2 = arith.constant 0 : index
    %1 = vector.load %arg2[%c0_1, %c0_2] : memref<8x128xf32, #tpu.memory_space<vmem>>, vector<8x128xf32>
    %cst = arith.constant dense<0.000000e+00> : vector<8x128xf32>
    %2 = tpu.matmul %0, %1, %cst {dimension_numbers = #tpu.dot_dimension_numbers<[1], [0], [0], [1], [0, 0, 1, 1], [], []>} : vector<8x8xf32>, vector<8x128xf32>, vector<8x128xf32> -> vector<8x128xf32>
    %cst_3 = arith.constant 0.000000e+00 : f32
    %3 = vector.broadcast %cst_3 : f32 to vector<8x128xf32>
    %4 = arith.maximumf %2, %3 : vector<8x128xf32>
    %c0_4 = arith.constant 0 : index
    %c0_5 = arith.constant 0 : index
    %5 = vector.load %arg3[%c0_4, %c0_5] : memref<128x128xf32, #tpu.memory_space<vmem>>, vector<128x128xf32>
    %cst_6 = arith.constant dense<0.000000e+00> : vector<8x128xf32>
    %6 = tpu.matmul %4, %5, %cst_6 {dimension_numbers = #tpu.dot_dimension_numbers<[1], [0], [0], [1], [0, 0, 1, 1], [], []>} : vector<8x128xf32>, vector<128x128xf32>, vector<8x128xf32> -> vector<8x128xf32>
    %cst_7 = arith.constant 0.000000e+00 : f32
    %7 = vector.broadcast %cst_7 : f32 to vector<8x128xf32>
    %8 = arith.maximumf %6, %7 : vector<8x128xf32>
    %c0_8 = arith.constant 0 : index
    %c0_9 = arith.constant 0 : index
    %9 = vector.load %arg4[%c0_8, %c0_9] : memref<128x8xf32, #tpu.memory_space<vmem>>, vector<128x8xf32>
    %cst_10 = arith.constant dense<0.000000e+00> : vector<8x8xf32>
    %10 = tpu.matmul %8, %9, %cst_10 {dimension_numbers = #tpu.dot_dimension_numbers<[1], [0], [0], [1], [0, 0, 1, 1], [], []>} : vector<8x128xf32>, vector<128x8xf32>, vector<8x8xf32> -> vector<8x8xf32>
    %c0_11 = arith.constant 0 : index
    %c0_12 = arith.constant 0 : index
    %11 = vector.load %arg5[%c0_11, %c0_12] : memref<8x8xf32, #tpu.memory_space<vmem>>, vector<8x8xf32>
    tpu.vector_store %arg5[%c0_11, %c0_12], %10 {strides = array<i32>} : memref<8x8xf32, #tpu.memory_space<vmem>>, vector<8x8xf32>,
    return
  }
  func.func @transform_0(%arg0: i32) -> (i32, i32) {
    %c0_i32 = arith.constant 0 : i32
    %c0_i32_0 = arith.constant 0 : i32
    return %arg0, %c0_i32 : i32, i32
  }
  func.func @transform_1(%arg0: i32) -> (i32, i32) {
    %c0_i32 = arith.constant 0 : i32
    %c0_i32_0 = arith.constant 0 : i32
    %c0_i32_1 = arith.constant 0 : i32
    return %c0_i32, %c0_i32_0 : i32, i32
  }
  func.func @transform_2(%arg0: i32) -> (i32, i32) {
    %c0_i32 = arith.constant 0 : i32
    %c0_i32_0 = arith.constant 0 : i32
    %c0_i32_1 = arith.constant 0 : i32
    return %c0_i32, %c0_i32_0 : i32, i32
  }
  func.func @transform_3(%arg0: i32) -> (i32, i32) {
    %c0_i32 = arith.constant 0 : i32
    %c0_i32_0 = arith.constant 0 : i32
    %c0_i32_1 = arith.constant 0 : i32
    return %c0_i32, %c0_i32_0 : i32, i32
  }
  func.func @transform_4(%arg0: i32) -> (i32, i32) {
    %c0_i32 = arith.constant 0 : i32
    %c0_i32_0 = arith.constant 0 : i32
    return %arg0, %c0_i32 : i32, i32
  }
}

</mosaic_0001>

<llo_original>
// kernel: tpu_custom_call.1
$region0: #{tpu_custom_call.1}
  #allocation0 [shape = 'u32[]', space=smem, size = 0x4, offset = 0x4, fixed_abs, tag = 'smem constant byte address 0x4 - core index']
  #allocation1 [shape = 'u32[144,128]{1,0:T(1,128)}', space=vmem, size = 0x12000, scoped, tag = 'internal scratch']
  %s0 = inlined_call_operand.vmem [shape: f32[8,8], index: 0, kind: input, shape index: {}]
  %s1 = inlined_call_operand.hbm [shape: f32[8,128], index: 1, kind: input, shape index: {}]
  %s2 = inlined_call_operand.vmem [shape: f32[128,128], index: 2, kind: input, shape index: {}]
  %s3 = inlined_call_operand.vmem [shape: f32[128,8], index: 3, kind: input, shape index: {}]
  %s4 = inlined_call_operand.hbm [shape: f32[8,8], index: 4, kind: output, shape index: {}]
  %s5 = sld [smem:[#allocation0]]
  $region30: #{tpu_custom_call.1} parent=0
    _
  %s7 = ssub.s32 1, %s5
  %s8 = scalar_select 0, %s7, %s5
  $region1: #{tpu_custom_call.1} parent=0
    #allocation2 [shape = 'u8[4096]{0}', space=vmem, size = 0x1000, scoped, tag = 'input window, operand 1, single buffered']
    #allocation3 [shape = 's32[1]{0}', space=sflag, size = 0x4, scoped, tag = 'scoped memory for tpu_custom_call.1']
    #allocation4 [shape = 's32[1]{0}', space=sflag, size = 0x4, scoped, tag = 'scoped memory for tpu_custom_call.1']
    #allocation5 [shape = 'u8[4096]{0}', space=vmem, size = 0x1000, scoped, tag = 'output window, operand 0, single buffered']
    %9 = vsyncpa [#allocation3], 0
    %10 = vsyncpa [#allocation4], 0
    // Predicated region
    $region2: #{tpu_custom_call.1} parent=1 // pred_check
      _
    $region3: #{tpu_custom_call.1} parent=1 // pred_check_branch
      %12 = sbr.rel (0) target = $region5
    $region4: #{tpu_custom_call.1} parent=1 // pred_region
      _
    $region5: #{tpu_custom_call.1} parent=1 // pred_fallthru
      _
    // Predicated region
    $region6: #{tpu_custom_call.1} parent=1 // pred_check
      _
    $region7: #{tpu_custom_call.1} parent=1 // pred_check_branch
      %14 = sbr.rel (0) target = $region9
    $region8: #{tpu_custom_call.1} parent=1 // pred_region
      %s16 = ssub.s32 128, 128
      %17 = vsyncadd [#allocation3], %s16
      %s19 = sshll.u32 [#allocation2], 4
      %s20 = int_to_ptr.vmem [resolvable:$true] %s19
      %22 = dma.hbm_to_vmem [thread:$0]  %s1, 128, %s20, [#allocation3]
    $region9: #{tpu_custom_call.1} parent=1 // pred_fallthru
      _
    // Predicated region
    $region10: #{tpu_custom_call.1} parent=1 // pred_check
      _
    $region11: #{tpu_custom_call.1} parent=1 // pred_check_branch
      %24 = sbr.rel (0) target = $region13
    $region12: #{tpu_custom_call.1} parent=1 // pred_region
      _
    $region13: #{tpu_custom_call.1} parent=1 // pred_fallthru
      _
    // Predicated region
    $region14: #{tpu_custom_call.1} parent=1 // pred_check
      _
    $region15: #{tpu_custom_call.1} parent=1 // pred_check_branch
      %26 = sbr.rel (0) target = $region17
    $region16: #{tpu_custom_call.1} parent=1 // pred_region
      _
    $region17: #{tpu_custom_call.1} parent=1 // pred_fallthru
      _
    // Predicated region
    $region18: #{tpu_custom_call.1} parent=1 // pred_check
      _
    $region19: #{tpu_custom_call.1} parent=1 // pred_check_branch
      %28 = sbr.rel (0) target = $region21
    $region20: #{tpu_custom_call.1} parent=1 // pred_region
      %29 = dma.done [#allocation3], 128
    $region21: #{tpu_custom_call.1} parent=1 // pred_fallthru
      _
    %v30 = vld [vmem:[%s0] sm:$0xff]
    %v31 = vld [vmem:[#allocation2] sm:$0xff]
    %vm32 = vcmask 64512
    %v34 = vsel %vm32, %v30, 0
    %36 = vmatprep.subr.mxu0 0.0
    %37 = vmatpush1.msra.mxu0 %v31
    %38 = vmatprep.subr.mxu0 0.0
    %39 = vmatpush1.msra.mxu0 0.0
    %40 = vmatprep.subr.mxu0 0.0
    %41 = vmatpush1.msra.mxu0 0.0
    %42 = vmatprep.subr.mxu0 0.0
    %43 = vmatpush1.msra.mxu0 0.0
    %44 = vmatprep.subr.mxu0 0.0
    %45 = vmatpush1.msra.mxu0 0.0
    %46 = vmatprep.subr.mxu0 0.0
    %47 = vmatpush1.msra.mxu0 0.0
    %48 = vmatprep.subr.mxu0 0.0
    %49 = vmatpush1.msra.mxu0 0.0
    %50 = vmatprep.subr.mxu0 0.0
    %51 = vmatpush1.msra.mxu0 0.0
    %52 = vmatprep.subr.mxu0 0.0
    %53 = vmatpush1.msra.mxu0 0.0
    %54 = vmatprep.subr.mxu0 0.0
    %55 = vmatpush1.msra.mxu0 0.0
    %56 = vmatprep.subr.mxu0 0.0
    %57 = vmatpush1.msra.mxu0 0.0
    %58 = vmatprep.subr.mxu0 0.0
    %59 = vmatpush1.msra.mxu0 0.0
    %60 = vmatprep.subr.mxu0 0.0
    %61 = vmatpush1.msra.mxu0 0.0
    %62 = vmatprep.subr.mxu0 0.0
    %63 = vmatpush1.msra.mxu0 0.0
    %64 = vmatprep.subr.mxu0 0.0
    %65 = vmatpush1.msra.mxu0 0.0
    %66 = vmatprep.subr.mxu0 0.0
    %67 = vmatpush1.msra.mxu0 0.0
    %68 = vmatprep.subr.mxu0 0.0
    %69 = vmatpush1.msra.mxu0 0.0
    %70 = vmatprep.subr.mxu0 0.0
    %71 = vmatpush1.msra.mxu0 0.0
    %72 = vmatprep.subr.mxu0 0.0
    %73 = vmatpush1.msra.mxu0 0.0
    %74 = vmatprep.subr.mxu0 0.0
    %75 = vmatpush1.msra.mxu0 0.0
    %76 = vmatprep.subr.mxu0 0.0
    %77 = vmatpush1.msra.mxu0 0.0
    %78 = vmatprep.subr.mxu0 0.0
    %79 = vmatpush1.msra.mxu0 0.0
    %80 = vmatprep.subr.mxu0 0.0
    %81 = vmatpush1.msra.mxu0 0.0
    %82 = vmatprep.subr.mxu0 0.0
    %83 = vmatpush1.msra.mxu0 0.0
    %84 = vmatprep.subr.mxu0 0.0
    %85 = vmatpush1.msra.mxu0 0.0
    %86 = vmatprep.subr.mxu0 0.0
    %87 = vmatpush1.msra.mxu0 0.0
    %88 = vmatprep.subr.mxu0 0.0
    %89 = vmatpush1.msra.mxu0 0.0
    %90 = vmatprep.subr.mxu0 0.0
    %91 = vmatpush1.msra.mxu0 0.0
    %92 = vmatprep.subr.mxu0 0.0
    %93 = vmatpush1.msra.mxu0 0.0
    %94 = vmatprep.subr.mxu0 0.0
    %95 = vmatpush1.msra.mxu0 0.0
    %96 = vmatprep.subr.mxu0 0.0
    %97 = vmatpush1.msra.mxu0 0.0
    %98 = vmatprep.subr.mxu0 0.0
    %99 = vmatpush1.msra.mxu0 0.0
    %100 = vmatprep.mubr.f32.mxu0 0.0
    %101 = vmatmul.mubr.f32.gmra.mrb[0].mxu0 %v34
    %v102 = vpop.f32.mrb[0].mxu0
    %v103 = vadd.f32 0.0, %v102
    %v104 = vpop.f32.mrb[0].mxu0
    %105 = vdwg.mxu0
    %v106 = vmax.f32 %v103, 0.0
    %v107 = vld [vmem:[%s2] sm:$0xff]
    %v108 = vld [vmem:[%s2 + $0x8] sm:$0xff]
    %v109 = vld [vmem:[%s2 + $0x10] sm:$0xff]
    %v110 = vld [vmem:[%s2 + $0x18] sm:$0xff]
    %v111 = vld [vmem:[%s2 + $0x20] sm:$0xff]
    %v112 = vld [vmem:[%s2 + $0x28] sm:$0xff]
    %v113 = vld [vmem:[%s2 + $0x30] sm:$0xff]
    %v114 = vld [vmem:[%s2 + $0x38] sm:$0xff]
    %v115 = vld [vmem:[%s2 + $0x40] sm:$0xff]
    %v116 = vld [vmem:[%s2 + $0x48] sm:$0xff]
    %v117 = vld [vmem:[%s2 + $0x50] sm:$0xff]
    %v118 = vld [vmem:[%s2 + $0x58] sm:$0xff]
    %v119 = vld [vmem:[%s2 + $0x60] sm:$0xff]
    %v120 = vld [vmem:[%s2 + $0x68] sm:$0xff]
    %v121 = vld [vmem:[%s2 + $0x70] sm:$0xff]
    %v122 = vld [vmem:[%s2 + $0x78] sm:$0xff]
    %123 = vmatprep.subr.mxu0 0.0
    %124 = vmatpush1.msra.mxu0 %v107
    %125 = vmatprep.subr.mxu0 0.0
    %126 = vmatpush1.msra.mxu0 %v108
    %127 = vmatprep.subr.mxu0 0.0
    %128 = vmatpush1.msra.mxu0 %v109
    %129 = vmatprep.subr.mxu0 0.0
    %130 = vmatpush1.msra.mxu0 %v110
    %131 = vmatprep.subr.mxu0 0.0
    %132 = vmatpush1.msra.mxu0 %v111
    %133 = vmatprep.subr.mxu0 0.0
    %134 = vmatpush1.msra.mxu0 %v112
    %135 = vmatprep.subr.mxu0 0.0
    %136 = vmatpush1.msra.mxu0 %v113
    %137 = vmatprep.subr.mxu0 0.0
    %138 = vmatpush1.msra.mxu0 %v114
    %139 = vmatprep.subr.mxu0 0.0
    %140 = vmatpush1.msra.mxu0 %v115
    %141 = vmatprep.subr.mxu0 0.0
    %142 = vmatpush1.msra.mxu0 %v116
    %143 = vmatprep.subr.mxu0 0.0
    %144 = vmatpush1.msra.mxu0 %v117
    %145 = vmatprep.subr.mxu0 0.0
    %146 = vmatpush1.msra.mxu0 %v118
    %147 = vmatprep.subr.mxu0 0.0
    %148 = vmatpush1.msra.mxu0 %v119
    %149 = vmatprep.subr.mxu0 0.0
    %150 = vmatpush1.msra.mxu0 %v120
    %151 = vmatprep.subr.mxu0 0.0
    %152 = vmatpush1.msra.mxu0 %v121
    %153 = vmatprep.subr.mxu0 0.0
    %154 = vmatpush1.msra.mxu0 %v122
    %155 = vmatprep.subr.mxu0 0.0
    %156 = vmatpush1.msra.mxu0 0.0
    %157 = vmatprep.subr.mxu0 0.0
    %158 = vmatpush1.msra.mxu0 0.0
    %159 = vmatprep.subr.mxu0 0.0
    %160 = vmatpush1.msra.mxu0 0.0
    %161 = vmatprep.subr.mxu0 0.0
    %162 = vmatpush1.msra.mxu0 0.0
    %163 = vmatprep.subr.mxu0 0.0
    %164 = vmatpush1.msra.mxu0 0.0
    %165 = vmatprep.subr.mxu0 0.0
    %166 = vmatpush1.msra.mxu0 0.0
    %167 = vmatprep.subr.mxu0 0.0
    %168 = vmatpush1.msra.mxu0 0.0
    %169 = vmatprep.subr.mxu0 0.0
    %170 = vmatpush1.msra.mxu0 0.0
    %171 = vmatprep.subr.mxu0 0.0
    %172 = vmatpush1.msra.mxu0 0.0
    %173 = vmatprep.subr.mxu0 0.0
    %174 = vmatpush1.msra.mxu0 0.0
    %175 = vmatprep.subr.mxu0 0.0
    %176 = vmatpush1.msra.mxu0 0.0
    %177 = vmatprep.subr.mxu0 0.0
    %178 = vmatpush1.msra.mxu0 0.0
    %179 = vmatprep.subr.mxu0 0.0
    %180 = vmatpush1.msra.mxu0 0.0
    %181 = vmatprep.subr.mxu0 0.0
    %182 = vmatpush1.msra.mxu0 0.0
    %183 = vmatprep.subr.mxu0 0.0
    %184 = vmatpush1.msra.mxu0 0.0
    %185 = vmatprep.subr.mxu0 0.0
    %186 = vmatpush1.msra.mxu0 0.0
    %187 = vmatprep.mubr.f32.mxu0 0.0
    %188 = vmatmul.mubr.f32.gmra.mrb[0].mxu0 %v106
    %v189 = vpop.f32.mrb[0].mxu0
    %v190 = vadd.f32 0.0, %v189
    %v191 = vpop.f32.mrb[0].mxu0
    %192 = vdwg.mxu0
    %v193 = vmax.f32 %v190, 0.0
    %v194 = vld [vmem:[%s3] sm:$0xff]
    %v195 = vld [vmem:[%s3 + $0x8] sm:$0xff]
    %v196 = vld [vmem:[%s3 + $0x10] sm:$0xff]
    %v197 = vld [vmem:[%s3 + $0x18] sm:$0xff]
    %v198 = vld [vmem:[%s3 + $0x20] sm:$0xff]
    %v199 = vld [vmem:[%s3 + $0x28] sm:$0xff]
    %v200 = vld [vmem:[%s3 + $0x30] sm:$0xff]
    %v201 = vld [vmem:[%s3 + $0x38] sm:$0xff]
    %v202 = vld [vmem:[%s3 + $0x40] sm:$0xff]
    %v203 = vld [vmem:[%s3 + $0x48] sm:$0xff]
    %v204 = vld [vmem:[%s3 + $0x50] sm:$0xff]
    %v205 = vld [vmem:[%s3 + $0x58] sm:$0xff]
    %v206 = vld [vmem:[%s3 + $0x60] sm:$0xff]
    %v207 = vld [vmem:[%s3 + $0x68] sm:$0xff]
    %v208 = vld [vmem:[%s3 + $0x70] sm:$0xff]
    %v209 = vld [vmem:[%s3 + $0x78] sm:$0xff]
    %210 = vmatprep.subr.mxu0 0.0
    %211 = vmatpush1.msra.mxu0 %v194
    %212 = vmatprep.subr.mxu0 0.0
    %213 = vmatpush1.msra.mxu0 %v195
    %214 = vmatprep.subr.mxu0 0.0
    %215 = vmatpush1.msra.mxu0 %v196
    %216 = vmatprep.subr.mxu0 0.0
    %217 = vmatpush1.msra.mxu0 %v197
    %218 = vmatprep.subr.mxu0 0.0
    %219 = vmatpush1.msra.mxu0 %v198
    %220 = vmatprep.subr.mxu0 0.0
    %221 = vmatpush1.msra.mxu0 %v199
    %222 = vmatprep.subr.mxu0 0.0
    %223 = vmatpush1.msra.mxu0 %v200
    %224 = vmatprep.subr.mxu0 0.0
    %225 = vmatpush1.msra.mxu0 %v201
    %226 = vmatprep.subr.mxu0 0.0
    %227 = vmatpush1.msra.mxu0 %v202
    %228 = vmatprep.subr.mxu0 0.0
    %229 = vmatpush1.msra.mxu0 %v203
    %230 = vmatprep.subr.mxu0 0.0
    %231 = vmatpush1.msra.mxu0 %v204
    %232 = vmatprep.subr.mxu0 0.0
    %233 = vmatpush1.msra.mxu0 %v205
    %234 = vmatprep.subr.mxu0 0.0
    %235 = vmatpush1.msra.mxu0 %v206
    %236 = vmatprep.subr.mxu0 0.0
    %237 = vmatpush1.msra.mxu0 %v207
    %238 = vmatprep.subr.mxu0 0.0
    %239 = vmatpush1.msra.mxu0 %v208
    %240 = vmatprep.subr.mxu0 0.0
    %241 = vmatpush1.msra.mxu0 %v209
    %242 = vmatprep.subr.mxu0 0.0
    %243 = vmatpush1.msra.mxu0 0.0
    %244 = vmatprep.subr.mxu0 0.0
    %245 = vmatpush1.msra.mxu0 0.0
    %246 = vmatprep.subr.mxu0 0.0
    %247 = vmatpush1.msra.mxu0 0.0
    %248 = vmatprep.subr.mxu0 0.0
    %249 = vmatpush1.msra.mxu0 0.0
    %250 = vmatprep.subr.mxu0 0.0
    %251 = vmatpush1.msra.mxu0 0.0
    %252 = vmatprep.subr.mxu0 0.0
    %253 = vmatpush1.msra.mxu0 0.0
    %254 = vmatprep.subr.mxu0 0.0
    %255 = vmatpush1.msra.mxu0 0.0
    %256 = vmatprep.subr.mxu0 0.0
    %257 = vmatpush1.msra.mxu0 0.0
    %258 = vmatprep.subr.mxu0 0.0
    %259 = vmatpush1.msra.mxu0 0.0
    %260 = vmatprep.subr.mxu0 0.0
    %261 = vmatpush1.msra.mxu0 0.0
    %262 = vmatprep.subr.mxu0 0.0
    %263 = vmatpush1.msra.mxu0 0.0
    %264 = vmatprep.subr.mxu0 0.0
    %265 = vmatpush1.msra.mxu0 0.0
    %266 = vmatprep.subr.mxu0 0.0
    %267 = vmatpush1.msra.mxu0 0.0
    %268 = vmatprep.subr.mxu0 0.0
    %269 = vmatpush1.msra.mxu0 0.0
    %270 = vmatprep.subr.mxu0 0.0
    %271 = vmatpush1.msra.mxu0 0.0
    %272 = vmatprep.subr.mxu0 0.0
    %273 = vmatpush1.msra.mxu0 0.0
    %274 = vmatprep.mubr.f32.mxu0 0.0
    %275 = vmatmul.mubr.f32.gmra.mrb[0].mxu0 %v193
    %v276 = vpop.f32.mrb[0].mxu0
    %v277 = vadd.f32 0.0, %v276
    %v278 = vpop.f32.mrb[0].mxu0
    %279 = vdwg.mxu0
    %280 = vst.msk [vmem:[#allocation5] sm:$0xff] %vm32, %v277
    // Predicated region
    $region22: #{tpu_custom_call.1} parent=1 // pred_check
      _
    $region23: #{tpu_custom_call.1} parent=1 // pred_check_branch
      %282 = sbr.rel (0) target = $region25
    $region24: #{tpu_custom_call.1} parent=1 // pred_region
      %s284 = ssub.s32 128, 128
      %285 = vsyncadd [#allocation4], %s284
      %s287 = sshll.u32 [#allocation5], 4
      %s288 = int_to_ptr.vmem [resolvable:$true] %s287
      %290 = dma.vmem_to_hbm [thread:$0]  %s288, 128, %s4, [#allocation4]
    $region25: #{tpu_custom_call.1} parent=1 // pred_fallthru
      _
    // Predicated region
    $region26: #{tpu_custom_call.1} parent=1 // pred_check
      _
    $region27: #{tpu_custom_call.1} parent=1 // pred_check_branch
      %292 = sbr.rel (0) target = $region29
    $region28: #{tpu_custom_call.1} parent=1 // pred_region
      %293 = dma.done [#allocation4], 128
    $region29: #{tpu_custom_call.1} parent=1 // pred_fallthru
      _
    %294 = vsyncpa [#allocation3], 1
    %295 = vsyncpa [#allocation4], 1

</llo_original>
